<compile_context>
chip_gen: v6e
topology: v6e:2x2x1
jax: 0.10.0
libtpu: 0.0.40
codegen_flags: <defaults>
</compile_context>

<pallas_src>
import functools

import jax
import jax.numpy as jnp
from jax.experimental import pallas as pl
from jax.experimental.pallas import tpu as pltpu


def _round_up(x, m):
    return ((x + m - 1) // m) * m


def _linear_kernel_bias(x_ref, w_ref, b_ref, o_ref, acc_ref):
    # x_ref: (tm, tk)  w_ref: (tk, tn)  b_ref: (1, tn)
    # o_ref: (tm, tn)  acc_ref: (tm, tn) f32 scratch (persists across K steps)
    k = pl.program_id(2)

    @pl.when(k == 0)
    def _():
        acc_ref[...] = jnp.zeros_like(acc_ref)

    acc_ref[...] += jnp.dot(
        x_ref[...], w_ref[...], preferred_element_type=jnp.float32
    )

    @pl.when(k == pl.num_programs(2) - 1)
    def _():
        # One-time f32 epilogue: bias add + cast (VPU is idle while MXU drains).
        o_ref[...] = (acc_ref[...] + b_ref[...].astype(jnp.float32)).astype(
            o_ref.dtype
        )


def _linear_kernel_nobias(x_ref, w_ref, o_ref, acc_ref):
    k = pl.program_id(2)

    @pl.when(k == 0)
    def _():
        acc_ref[...] = jnp.zeros_like(acc_ref)

    acc_ref[...] += jnp.dot(
        x_ref[...], w_ref[...], preferred_element_type=jnp.float32
    )

    @pl.when(k == pl.num_programs(2) - 1)
    def _():
        o_ref[...] = acc_ref[...].astype(o_ref.dtype)


def _pick_tiles(m, k, n):
    # 256-multiples of tm/tn feed the 2x256^2 MXU on v6e/v7x (and are also
    # 128-multiples for v5e's 4x128^2).  Footprint with double-buffered f32
    # inputs at (tm, tn, tk) = (256, 256, 512):
    #   2*(tm*tk + tk*tn)*4 + 2*tm*tn*4 + tm*tn*4  ~= 3.3 MiB
    # comfortably under v7x's 64 MiB VMEM and v5e's 16 MiB default scoped
    # limit, so double-buffering never degrades.
    tm, tn, tk = 256, 256, 512
    tm = min(tm, _round_up(m, 8))      # sublane multiple
    tn = min(tn, _round_up(n, 128))    # lane multiple (lane-dense output)
    tk = min(tk, _round_up(k, 128))    # lane multiple
    return tm, tn, tk


@jax.jit
def _linear_2d(x2d, w_t, b2d):
    """x2d: (M, K), w_t: (K, N) pre-transposed weight, b2d: (1, N) or None."""
    m, k = x2d.shape
    n = w_t.shape[1]

    tm, tn, tk = _pick_tiles(m, k, n)
    mp, kp, np_ = _round_up(m, tm), _round_up(k, tk), _round_up(n, tn)

    # Zero-pad to tile multiples (zeros along K do not change the result;
    # padded M/N rows/cols are sliced off at the end).
    xp = jnp.pad(x2d, ((0, mp - m), (0, kp - k)))
    wp = jnp.pad(w_t, ((0, kp - k), (0, np_ - n)))

    grid = (mp // tm, np_ // tn, kp // tk)  # reduction (K) axis last

    itemsize = jnp.dtype(x2d.dtype).itemsize
    cost = pl.CostEstimate(
        flops=2 * mp * np_ * kp,
        transcendentals=0,
        bytes_accessed=(mp * kp + kp * np_ + mp * np_) * itemsize
        + (0 if b2d is None else np_ * itemsize),
    )
    cparams = pltpu.CompilerParams(
        dimension_semantics=("parallel", "parallel", "arbitrary"),
        vmem_limit_bytes=48 * 1024 * 1024,
    )
    out_shape = jax.ShapeDtypeStruct((mp, np_), x2d.dtype)

    x_spec = pl.BlockSpec((tm, tk), lambda i, j, kk: (i, kk))
    w_spec = pl.BlockSpec((tk, tn), lambda i, j, kk: (kk, j))
    o_spec = pl.BlockSpec((tm, tn), lambda i, j, kk: (i, j))
    scratch = [pltpu.VMEM((tm, tn), jnp.float32)]

    if b2d is not None:
        bp = jnp.pad(b2d, ((0, 0), (0, np_ - n)))
        b_spec = pl.BlockSpec((1, tn), lambda i, j, kk: (0, j))
        outp = pl.pallas_call(
            _linear_kernel_bias,
            out_shape=out_shape,
            grid_spec=pltpu.PrefetchScalarGridSpec(
                num_scalar_prefetch=0,
                grid=grid,
                in_specs=[x_spec, w_spec, b_spec],
                out_specs=o_spec,
                scratch_shapes=scratch,
            ),
            compiler_params=cparams,
            cost_estimate=cost,
        )(xp, wp, bp)
    else:
        outp = pl.pallas_call(
            _linear_kernel_nobias,
            out_shape=out_shape,
            grid_spec=pltpu.PrefetchScalarGridSpec(
                num_scalar_prefetch=0,
                grid=grid,
                in_specs=[x_spec, w_spec],
                out_specs=o_spec,
                scratch_shapes=scratch,
            ),
            compiler_params=cparams,
            cost_estimate=cost,
        )(xp, wp)

    return outp[:m, :n]


def linear_nd(x, weight, bias=None):
    """LinearND forward.

    x:      (..., in_features)
    weight: (out_features, in_features)   -- PyTorch nn.Linear convention
    bias:   (out_features,) or None       -- use_bias derived from `bias`
    """
    in_features = x.shape[-1]
    out_features = weight.shape[0]
    lead = x.shape[:-1]
    m = 1
    for d in lead:
        m *= d

    # Degenerate shapes: no work for the kernel.
    if m == 0:
        return jnp.zeros(lead + (out_features,), dtype=x.dtype)
    if in_features == 0:
        out = jnp.zeros((m, out_features), dtype=x.dtype)
        if bias is not None:
            out = out + bias.astype(x.dtype)
        return out.reshape(lead + (out_features,))

    # TODO(synk): for tiny problems (M*K*N below a few MFLOPs) plain jnp.dot is
    # faster than any pallas_call (fixed ~us overhead dominates); an optional
    # bf16 cast of x/W (keeping f32 accumulation) would double MXU throughput
    # when model precision allows.
    x2d = x.reshape(m, in_features)
    w_t = weight.T  # (K, N): transpose paid once here, not per K-tile.
    b2d = None if bias is None else bias.reshape(1, out_features)
    out2d = _linear_2d(x2d, w_t, b2d)
    return out2d.reshape(lead + (out_features,))


def _reference(x, weight, bias):
    # Pure-JAX reference of the PyTorch forward.
    dims = x.shape
    out = x.reshape(-1, dims[-1]) @ weight.T
    if bias is not None:
        out = out + bias
    return out.reshape(dims[:-1] + (weight.shape[0],))


if __name__ == "__main__":
    key = jax.random.PRNGKey(0)

    # --- Test 1: small batch x time x feature, with bias (single-tile grid) ---
    batch, time, in_features, out_features = 2, 8, 32, 64
    k1, k2, k3, key = jax.random.split(key, 4)
    x = jax.random.normal(k1, (batch, time, in_features), dtype=jnp.float32)
    limit = (6.0 / (in_features + out_features)) ** 0.5  # Xavier-uniform-ish
    weight = jax.random.uniform(
        k2, (out_features, in_features), dtype=jnp.float32,
        minval=-limit, maxval=limit)
    bias = jax.random.uniform(
        k3, (out_features,), dtype=jnp.float32, minval=-limit, maxval=limit)

    out = jax.block_until_ready(linear_nd(x, weight, bias))
    ref = _reference(x, weight, bias)
    assert out.shape == (batch, time, out_features), out.shape
    assert jnp.allclose(out, ref, atol=1e-5, rtol=1e-5), "mismatch vs reference (bias)"

    # --- Test 2: non-tile-aligned shape, no bias (exercises multi-block grid + padding) ---
    batch2, time2, in2, out2 = 3, 100, 384, 320
    k4, k5, key = jax.random.split(key, 3)
    x2 = jax.random.normal(k4, (batch2, time2, in2), dtype=jnp.float32)
    limit2 = (6.0 / (in2 + out2)) ** 0.5
    weight2 = jax.random.uniform(
        k5, (out2, in2), dtype=jnp.float32, minval=-limit2, maxval=limit2)

    out_b = jax.block_until_ready(linear_nd(x2, weight2, None))
    ref_b = _reference(x2, weight2, None)
    assert out_b.shape == (batch2, time2, out2), out_b.shape
    assert jnp.allclose(out_b, ref_b, atol=1e-4, rtol=1e-4), "mismatch vs reference (nobias)"

    print("KERNEL_OK")
</pallas_src>

<mosaic_0001>
module attributes {stable_mosaic.version = 11 : i64} {
  func.func @_linear_kernel_bias(%arg0: i32, %arg1: i32, %arg2: i32, %arg3: memref<16x128xf32, #tpu.memory_space<vmem>>, %arg4: memref<128x128xf32, #tpu.memory_space<vmem>>, %arg5: memref<1x128xf32, #tpu.memory_space<vmem>>, %arg6: memref<16x128xf32, #tpu.memory_space<vmem>>, %arg7: memref<16x128xf32, #tpu.memory_space<vmem>>) attributes {dimension_semantics = [#tpu.dimension_semantics<parallel>, #tpu.dimension_semantics<parallel>, #tpu.dimension_semantics<arbitrary>], iteration_bounds = array<i64: 1, 1, 1>, scalar_prefetch = 0 : i64, scratch_operands = 1 : i64, tpu.core_type = #tpu.core_type<tc>, window_params = [{transform_indices = @transform_0, window_bounds = array<i64: 16, 128>}, {transform_indices = @transform_1, window_bounds = array<i64: 128, 128>}, {transform_indices = @transform_2, window_bounds = array<i64: 1, 128>}, {transform_indices = @transform_3, window_bounds = array<i64: 16, 128>}]} {
    %c0_i32 = arith.constant 0 : i32
    %0 = arith.cmpi eq, %arg2, %c0_i32 : i32
    %1 = arith.extui %0 : i1 to i32
    %c0_i32_0 = arith.constant 0 : i32
    %2 = arith.cmpi ne, %1, %c0_i32_0 : i32
    scf.if %2 {
      %cst_10 = arith.constant 0.000000e+00 : f32
      %12 = vector.broadcast %cst_10 : f32 to vector<16x128xf32>
      %c0_11 = arith.constant 0 : index
      %c0_12 = arith.constant 0 : index
      %13 = vector.load %arg7[%c0_11, %c0_12] : memref<16x128xf32, #tpu.memory_space<vmem>>, vector<16x128xf32>
      tpu.vector_store %arg7[%c0_11, %c0_12], %12 {strides = array<i32>} : memref<16x128xf32, #tpu.memory_space<vmem>>, vector<16x128xf32>,
    } else {
    }
    %c0 = arith.constant 0 : index
    %c0_1 = arith.constant 0 : index
    %3 = vector.load %arg7[%c0, %c0_1] : memref<16x128xf32, #tpu.memory_space<vmem>>, vector<16x128xf32>
    %c0_2 = arith.constant 0 : index
    %c0_3 = arith.constant 0 : index
    %4 = vector.load %arg3[%c0_2, %c0_3] : memref<16x128xf32, #tpu.memory_space<vmem>>, vector<16x128xf32>
    %c0_4 = arith.constant 0 : index
    %c0_5 = arith.constant 0 : index
    %5 = vector.load %arg4[%c0_4, %c0_5] : memref<128x128xf32, #tpu.memory_space<vmem>>, vector<128x128xf32>
    %cst = arith.constant dense<0.000000e+00> : vector<16x128xf32>
    %6 = tpu.matmul %4, %5, %cst {dimension_numbers = #tpu.dot_dimension_numbers<[1], [0], [0], [1], [0, 0, 1, 1], [], []>} : vector<16x128xf32>, vector<128x128xf32>, vector<16x128xf32> -> vector<16x128xf32>
    %7 = arith.addf %3, %6 : vector<16x128xf32>
    %c0_6 = arith.constant 0 : index
    %c0_7 = arith.constant 0 : index
    %8 = vector.load %arg7[%c0_6, %c0_7] : memref<16x128xf32, #tpu.memory_space<vmem>>, vector<16x128xf32>
    tpu.vector_store %arg7[%c0_6, %c0_7], %7 {strides = array<i32>} : memref<16x128xf32, #tpu.memory_space<vmem>>, vector<16x128xf32>,
    %c0_i32_8 = arith.constant 0 : i32
    %9 = arith.cmpi eq, %arg2, %c0_i32_8 : i32
    %10 = arith.extui %9 : i1 to i32
    %c0_i32_9 = arith.constant 0 : i32
    %11 = arith.cmpi ne, %10, %c0_i32_9 : i32
    scf.if %11 {
      %c0_10 = arith.constant 0 : index
      %c0_11 = arith.constant 0 : index
      %12 = vector.load %arg7[%c0_10, %c0_11] : memref<16x128xf32, #tpu.memory_space<vmem>>, vector<16x128xf32>
      %c0_12 = arith.constant 0 : index
      %c0_13 = arith.constant 0 : index
      %13 = vector.load %arg5[%c0_12, %c0_13] : memref<1x128xf32, #tpu.memory_space<vmem>>, vector<1x128xf32>
      %14 = vector.broadcast %13 : vector<1x128xf32> to vector<16x128xf32>
      %15 = arith.addf %12, %14 : vector<16x128xf32>
      %c0_14 = arith.constant 0 : index
      %c0_15 = arith.constant 0 : index
      %16 = vector.load %arg6[%c0_14, %c0_15] : memref<16x128xf32, #tpu.memory_space<vmem>>, vector<16x128xf32>
      tpu.vector_store %arg6[%c0_14, %c0_15], %15 {strides = array<i32>} : memref<16x128xf32, #tpu.memory_space<vmem>>, vector<16x128xf32>,
    } else {
    }
    return
  }
  func.func @transform_0(%arg0: i32, %arg1: i32, %arg2: i32) -> (i32, i32) {
    %c0_i32 = arith.constant 0 : i32
    return %arg0, %arg2 : i32, i32
  }
  func.func @transform_1(%arg0: i32, %arg1: i32, %arg2: i32) -> (i32, i32) {
    %c0_i32 = arith.constant 0 : i32
    return %arg2, %arg1 : i32, i32
  }
  func.func @transform_2(%arg0: i32, %arg1: i32, %arg2: i32) -> (i32, i32) {
    %c0_i32 = arith.constant 0 : i32
    %c0_i32_0 = arith.constant 0 : i32
    return %c0_i32, %arg1 : i32, i32
  }
  func.func @transform_3(%arg0: i32, %arg1: i32, %arg2: i32) -> (i32, i32) {
    %c0_i32 = arith.constant 0 : i32
    return %arg0, %arg1 : i32, i32
  }
}

</mosaic_0001>

<llo_original>
// kernel: _linear_2d.1
$region0: #{_linear_2d.1}
  #allocation0 [shape = 'u32[]', space=smem, size = 0x4, offset = 0x4, fixed_abs, tag = 'smem constant byte address 0x4 - core index']
  #allocation1 [shape = 'u32[144,128]{1,0:T(1,128)}', space=vmem, size = 0x12000, scoped, tag = 'internal scratch']
  #allocation2 [shape = 'f32[16,128]{1,0:T(8,128)}', space=vmem, size = 0x2000, scoped, tag = 'scratch operand']
  %s0 = inlined_call_operand.vmem [shape: f32[16,128], index: 0, kind: input, shape index: {}]
  %s1 = inlined_call_operand.vmem [shape: f32[128,128], index: 1, kind: input, shape index: {}]
  %s2 = inlined_call_operand.vmem [shape: f32[1,128], index: 2, kind: input, shape index: {}]
  %s3 = inlined_call_operand.hbm [shape: f32[16,128], index: 3, kind: output, shape index: {}]
  %s4 = sld [smem:[#allocation0]]
  $region30: #{_linear_2d.1} parent=0
    _
  %s6 = ssub.s32 1, %s4
  %s7 = scalar_select 0, %s6, %s4
  $region1: #{_linear_2d.1} parent=0
    #allocation3 [shape = 'u8[8192]{0}', space=vmem, size = 0x2000, scoped, tag = 'output window, operand 0, single buffered']
    #allocation4 [shape = 's32[1]{0}', space=sflag, size = 0x4, scoped, tag = 'scoped memory for _linear_2d.1']
    %8 = vsyncpa [#allocation4], 0
    // Predicated region
    $region2: #{_linear_2d.1} parent=1 // pred_check
      _
    $region3: #{_linear_2d.1} parent=1 // pred_check_branch
      %10 = sbr.rel (0) target = $region5
    $region4: #{_linear_2d.1} parent=1 // pred_region
      _
    $region5: #{_linear_2d.1} parent=1 // pred_fallthru
      _
    // Predicated region
    $region6: #{_linear_2d.1} parent=1 // pred_check
      _
    $region7: #{_linear_2d.1} parent=1 // pred_check_branch
      %12 = sbr.rel (0) target = $region9
    $region8: #{_linear_2d.1} parent=1 // pred_region
      _
    $region9: #{_linear_2d.1} parent=1 // pred_fallthru
      _
    // Predicated region
    $region10: #{_linear_2d.1} parent=1 // pred_check
      _
    $region11: #{_linear_2d.1} parent=1 // pred_check_branch
      %14 = sbr.rel (0) target = $region13
    $region12: #{_linear_2d.1} parent=1 // pred_region
      _
    $region13: #{_linear_2d.1} parent=1 // pred_fallthru
      _
    %p15 = scmp.eq.s32.totalorder 0, 0
    // Predicated region
    $region14: #{_linear_2d.1} parent=1 // pred_check
      %p16 = pneg %p15
    $region15: #{_linear_2d.1} parent=1 // pred_check_branch
      %18 = sbr.rel (%p16) target = $region17
    $region16: #{_linear_2d.1} parent=1 // pred_region
      %19 = vst [vmem:[#allocation2] sm:$0xff] 0.0
      %20 = vst [vmem:[#allocation2 + $0x8] sm:$0xff] 0.0
    $region17: #{_linear_2d.1} parent=1 // pred_fallthru
      _
    %v21 = vld [vmem:[#allocation2] sm:$0xff]
    %v22 = vld [vmem:[#allocation2 + $0x8] sm:$0xff]
    %v23 = vld [vmem:[%s0] sm:$0xff]
    %v24 = vld [vmem:[%s0 + $0x8] sm:$0xff]
    %v25 = vld [vmem:[%s1] sm:$0xff]
    %v26 = vld [vmem:[%s1 + $0x8] sm:$0xff]
    %v27 = vld [vmem:[%s1 + $0x10] sm:$0xff]
    %v28 = vld [vmem:[%s1 + $0x18] sm:$0xff]
    %v29 = vld [vmem:[%s1 + $0x20] sm:$0xff]
    %v30 = vld [vmem:[%s1 + $0x28] sm:$0xff]
    %v31 = vld [vmem:[%s1 + $0x30] sm:$0xff]
    %v32 = vld [vmem:[%s1 + $0x38] sm:$0xff]
    %v33 = vld [vmem:[%s1 + $0x40] sm:$0xff]
    %v34 = vld [vmem:[%s1 + $0x48] sm:$0xff]
    %v35 = vld [vmem:[%s1 + $0x50] sm:$0xff]
    %v36 = vld [vmem:[%s1 + $0x58] sm:$0xff]
    %v37 = vld [vmem:[%s1 + $0x60] sm:$0xff]
    %v38 = vld [vmem:[%s1 + $0x68] sm:$0xff]
    %v39 = vld [vmem:[%s1 + $0x70] sm:$0xff]
    %v40 = vld [vmem:[%s1 + $0x78] sm:$0xff]
    %41 = vmatprep.subr.mxu0 0.0
    %42 = vmatpush1.msra.mxu0 %v40
    %43 = vmatprep.subr.mxu0 0.0
    %44 = vmatpush1.msra.mxu0 %v39
    %45 = vmatprep.subr.mxu0 0.0
    %46 = vmatpush1.msra.mxu0 %v38
    %47 = vmatprep.subr.mxu0 0.0
    %48 = vmatpush1.msra.mxu0 %v37
    %49 = vmatprep.subr.mxu0 0.0
    %50 = vmatpush1.msra.mxu0 %v36
    %51 = vmatprep.subr.mxu0 0.0
    %52 = vmatpush1.msra.mxu0 %v35
    %53 = vmatprep.subr.mxu0 0.0
    %54 = vmatpush1.msra.mxu0 %v34
    %55 = vmatprep.subr.mxu0 0.0
    %56 = vmatpush1.msra.mxu0 %v33
    %57 = vmatprep.subr.mxu0 0.0
    %58 = vmatpush1.msra.mxu0 %v32
    %59 = vmatprep.subr.mxu0 0.0
    %60 = vmatpush1.msra.mxu0 %v31
    %61 = vmatprep.subr.mxu0 0.0
    %62 = vmatpush1.msra.mxu0 %v30
    %63 = vmatprep.subr.mxu0 0.0
    %64 = vmatpush1.msra.mxu0 %v29
    %65 = vmatprep.subr.mxu0 0.0
    %66 = vmatpush1.msra.mxu0 %v28
    %67 = vmatprep.subr.mxu0 0.0
    %68 = vmatpush1.msra.mxu0 %v27
    %69 = vmatprep.subr.mxu0 0.0
    %70 = vmatpush1.msra.mxu0 %v26
    %71 = vmatprep.subr.mxu0 0.0
    %72 = vmatpush1.msra.mxu0 %v25
    %73 = vmatprep.subr.mxu0 0.0
    %74 = vmatpush2.msra.mxu0 0.0
    %75 = vmatprep.subr.mxu0 0.0
    %76 = vmatpush2.msra.mxu0 0.0
    %77 = vmatprep.subr.mxu0 0.0
    %78 = vmatpush2.msra.mxu0 0.0
    %79 = vmatprep.subr.mxu0 0.0
    %80 = vmatpush2.msra.mxu0 0.0
    %81 = vmatprep.subr.mxu0 0.0
    %82 = vmatpush2.msra.mxu0 0.0
    %83 = vmatprep.subr.mxu0 0.0
    %84 = vmatpush2.msra.mxu0 0.0
    %85 = vmatprep.subr.mxu0 0.0
    %86 = vmatpush2.msra.mxu0 0.0
    %87 = vmatprep.subr.mxu0 0.0
    %88 = vmatpush2.msra.mxu0 0.0
    %89 = vmatprep.subr.mxu0 0.0
    %90 = vmatpush2.msra.mxu0 0.0
    %91 = vmatprep.subr.mxu0 0.0
    %92 = vmatpush2.msra.mxu0 0.0
    %93 = vmatprep.subr.mxu0 0.0
    %94 = vmatpush2.msra.mxu0 0.0
    %95 = vmatprep.subr.mxu0 0.0
    %96 = vmatpush2.msra.mxu0 0.0
    %97 = vmatprep.subr.mxu0 0.0
    %98 = vmatpush2.msra.mxu0 0.0
    %99 = vmatprep.subr.mxu0 0.0
    %100 = vmatpush2.msra.mxu0 0.0
    %101 = vmatprep.subr.mxu0 0.0
    %102 = vmatpush2.msra.mxu0 0.0
    %103 = vmatprep.subr.mxu0 0.0
    %104 = vmatpush2.msra.mxu0 0.0
    %105 = vmatprep.mubr.f32.mxu0 0.0
    %106 = vmatmul.mubr.f32.gmra.mxu0 %v23
    %v107 = vpop.f32.mrf.mxu0
    %v108 = vadd.f32 0.0, %v107
    %v109 = vpop.f32.mrf.mxu0
    %110 = vmatprep.mubr.f32.mxu0 0.0
    %111 = vmatmul.mubr.f32.gmra.mxu0 %v24
    %v112 = vpop.f32.mrf.mxu0
    %v113 = vadd.f32 0.0, %v112
    %v114 = vpop.f32.mrf.mxu0
    %115 = vdwg.mxu0
    %v116 = vadd.f32 %v21, %v108
    %v117 = vadd.f32 %v22, %v113
    %118 = vst [vmem:[#allocation2] sm:$0xff] %v116
    %119 = vst [vmem:[#allocation2 + $0x8] sm:$0xff] %v117
    // Predicated region
    $region18: #{_linear_2d.1} parent=1 // pred_check
      %p120 = pneg %p15
    $region19: #{_linear_2d.1} parent=1 // pred_check_branch
      %122 = sbr.rel (%p120) target = $region21
    $region20: #{_linear_2d.1} parent=1 // pred_region
      %v123 = vld [vmem:[#allocation2] sm:$0xff]
      %v124 = vld [vmem:[#allocation2 + $0x8] sm:$0xff]
      %v125 = vld [vmem:[%s2] sm:$0x1]
      %v127 = vlaneseq
      %v128 = vshrl.u32 %v127, 7
      %v129 = vsub.s32 0, %v128
      %v130 = vrot.slane %v125, %v129
      %v132 = vadd.f32 %v123, %v130
      %v133 = vadd.f32 %v124, %v130
      %134 = vst [vmem:[#allocation3] sm:$0xff] %v132
      %135 = vst [vmem:[#allocation3 + $0x8] sm:$0xff] %v133
    $region21: #{_linear_2d.1} parent=1 // pred_fallthru
      _
    // Predicated region
    $region22: #{_linear_2d.1} parent=1 // pred_check
      _
    $region23: #{_linear_2d.1} parent=1 // pred_check_branch
      %137 = sbr.rel (0) target = $region25
    $region24: #{_linear_2d.1} parent=1 // pred_region
      %s139 = ssub.s32 256, 256
      %140 = vsyncadd [#allocation4], %s139
      %s141 = sshll.u32 [#allocation3], 4
      %s142 = int_to_ptr.vmem [resolvable:$true] %s141
      %147 = dma.vmem_to_hbm [thread:$0]  %s142, 256, %s3, [#allocation4], 128, 128, 8
    $region25: #{_linear_2d.1} parent=1 // pred_fallthru
      _
    // Predicated region
    $region26: #{_linear_2d.1} parent=1 // pred_check
      _
    $region27: #{_linear_2d.1} parent=1 // pred_check_branch
      %149 = sbr.rel (0) target = $region29
    $region28: #{_linear_2d.1} parent=1 // pred_region
      %150 = dma.done [#allocation4], 256
    $region29: #{_linear_2d.1} parent=1 // pred_fallthru
      _
    %151 = vsyncpa [#allocation4], 1

</llo_original>
